<compile_context>
chip_gen: v5e
topology: v5e:2x2
jax: 0.10.0
libtpu: 0.0.40
codegen_flags: <defaults>
</compile_context>

<pallas_src>
import functools

import jax
import jax.numpy as jnp
from jax.experimental import pallas as pl
from jax.experimental.pallas import tpu as pltpu

LANE = 128  # TPU lane width; lin2 output is padded to this for dense stores.


def _edge_classifier_kernel(
    x_ref,      # [N, F]        node features                (compute dtype)
    a_ref,      # [N, N]        normalized adjacency         (compute dtype)
    w1_ref,     # [F, H]        conv1 weight                 (compute dtype)
    w2_ref,     # [H, H]        conv2 weight                 (compute dtype)
    sel_ref,    # [2E, N]       stacked one-hot gather (src rows, then dst rows)
    ea_ref,     # [E, Fe]       edge attributes              (compute dtype)
    wl1_ref,    # [2H+Fe, H]    fused lin1 weight [Ws; Wd; We]
    wl2_ref,    # [H, LANE]     lin2 weight, zero-padded to 128 lanes
    bias_ref,   # [4, LANE]     packed biases: b1, b2, bl1 (first H), bl2 (first LANE)
    out_ref,    # [E, LANE]     lane-dense output (cols >= C are zero)
    *, num_edges, hidden,
):
    f32 = jnp.float32
    H = hidden
    E = num_edges

    def mm(a, b):  # MXU matmul with f32 accumulation
        return jnp.dot(a, b, preferred_element_type=f32)

    cd = w1_ref.dtype  # compute dtype for MXU operands (f32 or bf16)

    b1 = bias_ref[0:1, :H].astype(f32)
    b2 = bias_ref[1:2, :H].astype(f32)
    bl1 = bias_ref[2:3, :H].astype(f32)
    bl2 = bias_ref[3:4, :].astype(f32)

    # ---- GCN layer 1: relu(A_norm @ (X @ W1) + b1) ----
    xw1 = mm(x_ref[...], w1_ref[...])                       # [N, H] f32
    h1 = jnp.maximum(mm(a_ref[...], xw1.astype(cd)) + b1, 0.0)

    # ---- GCN layer 2: relu(A_norm @ (H1 @ W2) + b2) ----
    hw2 = mm(h1.astype(cd), w2_ref[...])
    h2 = jnp.maximum(mm(a_ref[...], hw2.astype(cd)) + b2, 0.0)   # [N, H] f32

    # ---- Fused edge gathers: one [2E,N] @ [N,H] matmul, then static slices ----
    gathered = mm(sel_ref[...], h2.astype(cd))              # [2E, H] f32
    xs = gathered[:E, :]                                    # x[edge_index[0]]
    xd = gathered[E:, :]                                    # x[edge_index[1]]

    # ---- Fused lin1: concat([xs | xd | ea]) @ [Ws; Wd; We] (single MXU pass) ----
    feat = jnp.concatenate([xs, xd, ea_ref[...].astype(f32)], axis=1)  # [E, 2H+Fe]
    z = jnp.maximum(mm(feat.astype(cd), wl1_ref[...]) + bl1, 0.0)

    # TODO(synk): dropout(p=0.5) is identity at inference (training=False).

    # ---- lin2 into a lane-dense [E, 128] tile ----
    out = mm(z.astype(cd), wl2_ref[...]) + bl2
    out_ref[...] = out.astype(out_ref.dtype)


def _edge_classifier_pallas(x, a_norm, sel_oh, edge_attr, fused, *, num_edges, hidden):
    kernel = functools.partial(
        _edge_classifier_kernel, num_edges=num_edges, hidden=hidden)
    vmem = pl.BlockSpec(memory_space=pltpu.MemorySpace.VMEM)
    inputs = (
        x, a_norm,
        fused["w1"], fused["w2"],
        sel_oh, edge_attr,
        fused["wl1"], fused["wl2_pad"], fused["bias_pack"],
    )
    return pl.pallas_call(
        kernel,
        out_shape=jax.ShapeDtypeStruct((num_edges, LANE), jnp.float32),
        in_specs=[vmem] * len(inputs),
        out_specs=vmem,
        compiler_params=pltpu.CompilerParams(
            vmem_limit_bytes=32 * 1024 * 1024),  # explicit, headroom for larger graphs
    )(*inputs)


def build_normalized_adjacency(edge_index, num_nodes):
    """Dense D^-1/2 (A + I) D^-1/2 exactly as PyG GCNConv (default flags)."""
    row = edge_index[0]  # source
    col = edge_index[1]  # target
    loop = jnp.arange(num_nodes, dtype=edge_index.dtype)
    row = jnp.concatenate([row, loop])
    col = jnp.concatenate([col, loop])
    a_hat = jnp.zeros((num_nodes, num_nodes), jnp.float32).at[col, row].add(1.0)
    deg = a_hat.sum(axis=1)
    dinv = jnp.where(deg > 0, jax.lax.rsqrt(deg), 0.0)
    return dinv[:, None] * a_hat * dinv[None, :]


@functools.partial(
    jax.jit,
    static_argnames=("num_nodes", "hidden", "num_classes", "compute_dtype"))
def edge_classifier_forward(x, edge_index, edge_attr, params, *, num_nodes,
                            hidden, num_classes, compute_dtype=jnp.float32):
    """End-to-end jitted forward: glue (adjacency, one-hot, packing) + kernel."""
    cd = compute_dtype
    E = edge_attr.shape[0]
    H = hidden

    a_norm = build_normalized_adjacency(edge_index, num_nodes)
    # Stacked gather selector: first E rows pick src nodes, last E pick dst nodes.
    sel_oh = jax.nn.one_hot(
        jnp.concatenate([edge_index[0], edge_index[1]]), num_nodes, dtype=cd)

    # Lane-dense lin2 weight / packed biases (all biases in one [4,128] buffer).
    C = params["wl2"].shape[1]
    wl2_pad = jnp.zeros((H, LANE), jnp.float32).at[:, :C].set(params["wl2"])
    bias_pack = jnp.zeros((4, LANE), jnp.float32)
    bias_pack = bias_pack.at[0, :H].set(params["b1"][0])
    bias_pack = bias_pack.at[1, :H].set(params["b2"][0])
    bias_pack = bias_pack.at[2, :H].set(params["bl1"][0])
    bias_pack = bias_pack.at[3, :C].set(params["bl2"][0])

    fused = {
        "w1": params["w1"].astype(cd),
        "w2": params["w2"].astype(cd),
        "wl1": jnp.concatenate(
            [params["wl1_s"], params["wl1_d"], params["wl1_e"]], axis=0).astype(cd),
        "wl2_pad": wl2_pad.astype(cd),
        "bias_pack": bias_pack,  # biases stay f32 (added after f32 accumulation)
    }

    out_pad = _edge_classifier_pallas(
        x.astype(cd), a_norm.astype(cd), sel_oh, edge_attr.astype(cd), fused,
        num_edges=E, hidden=H)
    return out_pad[:, :num_classes]


def init_params(key, num_node_features, num_edge_features, hidden, num_classes):
    """Deterministic synthetic parameters matching the module's shapes."""
    ks = jax.random.split(key, 8)

    def u(k, shape, fan_in):
        bound = 1.0 / jnp.sqrt(jnp.float32(fan_in))
        return jax.random.uniform(k, shape, jnp.float32, -bound, bound)

    F, H, Fe, C = num_node_features, hidden, num_edge_features, num_classes
    lin1_in = Fe + 2 * H
    # lin1 weight in PyTorch is [H, lin1_in]; we store its transpose split into
    # the three input blocks [x_src | x_dst | edge_attr].
    wl1_t = u(ks[4], (lin1_in, H), lin1_in)
    return {
        "w1": u(ks[0], (F, H), F),
        "b1": u(ks[1], (1, H), F),
        "w2": u(ks[2], (H, H), H),
        "b2": u(ks[3], (1, H), H),
        "wl1_s": wl1_t[:H, :],
        "wl1_d": wl1_t[H:2 * H, :],
        "wl1_e": wl1_t[2 * H:, :],
        "bl1": u(ks[5], (1, H), lin1_in),
        "wl2": u(ks[6], (H, C), H),
        "bl2": u(ks[7], (1, C), H),
    }


def reference_forward(x, edge_index, edge_attr, params, num_nodes):
    """Pure-JAX f32 reference of the PyTorch forward (eval mode)."""
    a_norm = build_normalized_adjacency(edge_index, num_nodes)
    h1 = jax.nn.relu(a_norm @ (x @ params["w1"]) + params["b1"])
    h2 = jax.nn.relu(a_norm @ (h1 @ params["w2"]) + params["b2"])
    xs = h2[edge_index[0]]
    xd = h2[edge_index[1]]
    z = jax.nn.relu(xs @ params["wl1_s"] + xd @ params["wl1_d"]
                    + edge_attr @ params["wl1_e"] + params["bl1"])
    return z @ params["wl2"] + params["bl2"]


if __name__ == "__main__":
    NUM_NODES = 16
    NUM_EDGES = 24          # multiple of 8 -> clean sublane tiling of [E, 128] output
    NODE_FEATURES = 6
    EDGE_FEATURES = 4
    HIDDEN = 32
    CLASSES = 2

    key = jax.random.PRNGKey(0)
    k_x, k_src, k_dst, k_ea, k_params = jax.random.split(key, 5)

    x = jax.random.normal(k_x, (NUM_NODES, NODE_FEATURES), jnp.float32)
    src = jax.random.randint(k_src, (NUM_EDGES,), 0, NUM_NODES, jnp.int32)
    dst = jax.random.randint(k_dst, (NUM_EDGES,), 0, NUM_NODES, jnp.int32)
    edge_index = jnp.stack([src, dst], axis=0)                 # [2, E]
    edge_attr = jax.random.normal(k_ea, (NUM_EDGES, EDGE_FEATURES), jnp.float32)

    params = init_params(k_params, NODE_FEATURES, EDGE_FEATURES, HIDDEN, CLASSES)

    ref = reference_forward(x, edge_index, edge_attr, params, NUM_NODES)

    # f32 path: exact match vs reference.
    out_f32 = edge_classifier_forward(
        x, edge_index, edge_attr, params,
        num_nodes=NUM_NODES, hidden=HIDDEN, num_classes=CLASSES,
        compute_dtype=jnp.float32)
    out_f32 = jax.block_until_ready(out_f32)
    assert out_f32.shape == (NUM_EDGES, CLASSES)
    assert jnp.allclose(out_f32, ref, atol=1e-4, rtol=1e-4), "f32 mismatch vs reference"

    # bf16 MXU-operand path (f32 accumulation/activations): loose tolerance.
    out_bf16 = edge_classifier_forward(
        x, edge_index, edge_attr, params,
        num_nodes=NUM_NODES, hidden=HIDDEN, num_classes=CLASSES,
        compute_dtype=jnp.bfloat16)
    out_bf16 = jax.block_until_ready(out_bf16)
    assert out_bf16.shape == (NUM_EDGES, CLASSES)
    assert jnp.allclose(out_bf16, ref, atol=1e-1, rtol=1e-1), "bf16 mismatch vs reference"

    print("KERNEL_OK")
</pallas_src>

<mosaic_0001>
module attributes {stable_mosaic.version = 11 : i64} {
  func.func @_edge_classifier_kernel(%arg0: memref<16x6xf32, #tpu.memory_space<vmem>>, %arg1: memref<16x16xf32, #tpu.memory_space<vmem>>, %arg2: memref<6x32xf32, #tpu.memory_space<vmem>>, %arg3: memref<32x32xf32, #tpu.memory_space<vmem>>, %arg4: memref<48x16xf32, #tpu.memory_space<vmem>>, %arg5: memref<24x4xf32, #tpu.memory_space<vmem>>, %arg6: memref<68x32xf32, #tpu.memory_space<vmem>>, %arg7: memref<32x128xf32, #tpu.memory_space<vmem>>, %arg8: memref<4x128xf32, #tpu.memory_space<vmem>>, %arg9: memref<24x128xf32, #tpu.memory_space<vmem>>) attributes {dimension_semantics = [], scalar_prefetch = 0 : i64, scratch_operands = 0 : i64, tpu.core_type = #tpu.core_type<tc>} {
    %c0 = arith.constant 0 : index
    %c0_0 = arith.constant 0 : index
    %0 = vector.load %arg8[%c0, %c0_0] : memref<4x128xf32, #tpu.memory_space<vmem>>, vector<1x32xf32>
    %c1 = arith.constant 1 : index
    %c0_1 = arith.constant 0 : index
    %1 = vector.load %arg8[%c1, %c0_1] : memref<4x128xf32, #tpu.memory_space<vmem>>, vector<1x32xf32>
    %c2 = arith.constant 2 : index
    %c0_2 = arith.constant 0 : index
    %2 = vector.load %arg8[%c2, %c0_2] : memref<4x128xf32, #tpu.memory_space<vmem>>, vector<1x32xf32>
    %c3 = arith.constant 3 : index
    %c0_3 = arith.constant 0 : index
    %3 = vector.load %arg8[%c3, %c0_3] : memref<4x128xf32, #tpu.memory_space<vmem>>, vector<1x128xf32>
    %c0_4 = arith.constant 0 : index
    %c0_5 = arith.constant 0 : index
    %4 = vector.load %arg0[%c0_4, %c0_5] : memref<16x6xf32, #tpu.memory_space<vmem>>, vector<16x6xf32>
    %c0_6 = arith.constant 0 : index
    %c0_7 = arith.constant 0 : index
    %5 = vector.load %arg2[%c0_6, %c0_7] : memref<6x32xf32, #tpu.memory_space<vmem>>, vector<6x32xf32>
    %cst = arith.constant dense<0.000000e+00> : vector<16x32xf32>
    %6 = tpu.matmul %4, %5, %cst {dimension_numbers = #tpu.dot_dimension_numbers<[1], [0], [0], [1], [0, 0, 1, 1], [], []>} : vector<16x6xf32>, vector<6x32xf32>, vector<16x32xf32> -> vector<16x32xf32>
    %c0_8 = arith.constant 0 : index
    %c0_9 = arith.constant 0 : index
    %7 = vector.load %arg1[%c0_8, %c0_9] : memref<16x16xf32, #tpu.memory_space<vmem>>, vector<16x16xf32>
    %cst_10 = arith.constant dense<0.000000e+00> : vector<16x32xf32>
    %8 = tpu.matmul %7, %6, %cst_10 {dimension_numbers = #tpu.dot_dimension_numbers<[1], [0], [0], [1], [0, 0, 1, 1], [], []>} : vector<16x16xf32>, vector<16x32xf32>, vector<16x32xf32> -> vector<16x32xf32>
    %9 = vector.broadcast %0 : vector<1x32xf32> to vector<16x32xf32>
    %10 = arith.addf %8, %9 : vector<16x32xf32>
    %cst_11 = arith.constant 0.000000e+00 : f32
    %11 = vector.broadcast %cst_11 : f32 to vector<16x32xf32>
    %12 = arith.maximumf %10, %11 : vector<16x32xf32>
    %c0_12 = arith.constant 0 : index
    %c0_13 = arith.constant 0 : index
    %13 = vector.load %arg3[%c0_12, %c0_13] : memref<32x32xf32, #tpu.memory_space<vmem>>, vector<32x32xf32>
    %cst_14 = arith.constant dense<0.000000e+00> : vector<16x32xf32>
    %14 = tpu.matmul %12, %13, %cst_14 {dimension_numbers = #tpu.dot_dimension_numbers<[1], [0], [0], [1], [0, 0, 1, 1], [], []>} : vector<16x32xf32>, vector<32x32xf32>, vector<16x32xf32> -> vector<16x32xf32>
    %c0_15 = arith.constant 0 : index
    %c0_16 = arith.constant 0 : index
    %15 = vector.load %arg1[%c0_15, %c0_16] : memref<16x16xf32, #tpu.memory_space<vmem>>, vector<16x16xf32>
    %cst_17 = arith.constant dense<0.000000e+00> : vector<16x32xf32>
    %16 = tpu.matmul %15, %14, %cst_17 {dimension_numbers = #tpu.dot_dimension_numbers<[1], [0], [0], [1], [0, 0, 1, 1], [], []>} : vector<16x16xf32>, vector<16x32xf32>, vector<16x32xf32> -> vector<16x32xf32>
    %17 = vector.broadcast %1 : vector<1x32xf32> to vector<16x32xf32>
    %18 = arith.addf %16, %17 : vector<16x32xf32>
    %cst_18 = arith.constant 0.000000e+00 : f32
    %19 = vector.broadcast %cst_18 : f32 to vector<16x32xf32>
    %20 = arith.maximumf %18, %19 : vector<16x32xf32>
    %c0_19 = arith.constant 0 : index
    %c0_20 = arith.constant 0 : index
    %21 = vector.load %arg4[%c0_19, %c0_20] : memref<48x16xf32, #tpu.memory_space<vmem>>, vector<48x16xf32>
    %cst_21 = arith.constant dense<0.000000e+00> : vector<48x32xf32>
    %22 = tpu.matmul %21, %20, %cst_21 {dimension_numbers = #tpu.dot_dimension_numbers<[1], [0], [0], [1], [0, 0, 1, 1], [], []>} : vector<48x16xf32>, vector<16x32xf32>, vector<48x32xf32> -> vector<48x32xf32>
    %23 = vector.extract_strided_slice %22 {offsets = [0, 0], sizes = [24, 32], strides = [1, 1]} : vector<48x32xf32> to vector<24x32xf32>
    %24 = vector.extract_strided_slice %22 {offsets = [24, 0], sizes = [24, 32], strides = [1, 1]} : vector<48x32xf32> to vector<24x32xf32>
    %c0_22 = arith.constant 0 : index
    %c0_23 = arith.constant 0 : index
    %25 = vector.load %arg5[%c0_22, %c0_23] : memref<24x4xf32, #tpu.memory_space<vmem>>, vector<24x4xf32>
    %26 = tpu.concatenate %23, %24, %25 in 1 : vector<24x32xf32>, vector<24x32xf32>, vector<24x4xf32> -> vector<24x68xf32>
    %c0_24 = arith.constant 0 : index
    %c0_25 = arith.constant 0 : index
    %27 = vector.load %arg6[%c0_24, %c0_25] : memref<68x32xf32, #tpu.memory_space<vmem>>, vector<68x32xf32>
    %cst_26 = arith.constant dense<0.000000e+00> : vector<24x32xf32>
    %28 = tpu.matmul %26, %27, %cst_26 {dimension_numbers = #tpu.dot_dimension_numbers<[1], [0], [0], [1], [0, 0, 1, 1], [], []>} : vector<24x68xf32>, vector<68x32xf32>, vector<24x32xf32> -> vector<24x32xf32>
    %29 = vector.broadcast %2 : vector<1x32xf32> to vector<24x32xf32>
    %30 = arith.addf %28, %29 : vector<24x32xf32>
    %cst_27 = arith.constant 0.000000e+00 : f32
    %31 = vector.broadcast %cst_27 : f32 to vector<24x32xf32>
    %32 = arith.maximumf %30, %31 : vector<24x32xf32>
    %c0_28 = arith.constant 0 : index
    %c0_29 = arith.constant 0 : index
    %33 = vector.load %arg7[%c0_28, %c0_29] : memref<32x128xf32, #tpu.memory_space<vmem>>, vector<32x128xf32>
    %cst_30 = arith.constant dense<0.000000e+00> : vector<24x128xf32>
    %34 = tpu.matmul %32, %33, %cst_30 {dimension_numbers = #tpu.dot_dimension_numbers<[1], [0], [0], [1], [0, 0, 1, 1], [], []>} : vector<24x32xf32>, vector<32x128xf32>, vector<24x128xf32> -> vector<24x128xf32>
    %35 = vector.broadcast %3 : vector<1x128xf32> to vector<24x128xf32>
    %36 = arith.addf %34, %35 : vector<24x128xf32>
    %c0_31 = arith.constant 0 : index
    %c0_32 = arith.constant 0 : index
    %37 = vector.load %arg9[%c0_31, %c0_32] : memref<24x128xf32, #tpu.memory_space<vmem>>, vector<24x128xf32>
    tpu.vector_store %arg9[%c0_31, %c0_32], %36 {strides = array<i32>} : memref<24x128xf32, #tpu.memory_space<vmem>>, vector<24x128xf32>,
    return
  }
}

</mosaic_0001>

<llo_original>
// kernel: edge_classifier_forward.1
$region0: #{edge_classifier_forward.1}
  #allocation0 [shape = 'u32[]', space=smem, size = 0x4, offset = 0x4, fixed_abs, tag = 'smem constant byte address 0x4 - core index']
  #allocation1 [shape = 'u32[72,128]{1,0:T(1,128)}', space=vmem, size = 0x9000, scoped, tag = 'internal scratch']
  %s0 = inlined_call_operand.vmem [shape: f32[16,6], index: 0, kind: input, shape index: {}]
  %s1 = inlined_call_operand.vmem [shape: f32[16,16], index: 1, kind: input, shape index: {}]
  %s2 = inlined_call_operand.vmem [shape: f32[6,32], index: 2, kind: input, shape index: {}]
  %s3 = inlined_call_operand.vmem [shape: f32[32,32], index: 3, kind: input, shape index: {}]
  %s4 = inlined_call_operand.vmem [shape: f32[48,16], index: 4, kind: input, shape index: {}]
  %s5 = inlined_call_operand.vmem [shape: f32[24,4], index: 5, kind: input, shape index: {}]
  %s6 = inlined_call_operand.vmem [shape: f32[68,32], index: 6, kind: input, shape index: {}]
  %s7 = inlined_call_operand.vmem [shape: f32[32,128], index: 7, kind: input, shape index: {}]
  %s8 = inlined_call_operand.vmem [shape: f32[4,128], index: 8, kind: input, shape index: {}]
  %s9 = inlined_call_operand.vmem [shape: f32[24,128], index: 9, kind: output, shape index: {}]
  %s10 = sld [smem:[#allocation0]]
  $region46: #{edge_classifier_forward.1} parent=0
    _
  %s12 = ssub.s32 1, %s10
  %s13 = scalar_select 0, %s12, %s10
  // Predicated region
  $region2: #{edge_classifier_forward.1} parent=0 // pred_check
    _
  $region3: #{edge_classifier_forward.1} parent=0 // pred_check_branch
    %15 = sbr.rel (0) target = $region5
  $region4: #{edge_classifier_forward.1} parent=0 // pred_region
    _
  $region5: #{edge_classifier_forward.1} parent=0 // pred_fallthru
    _
  // Predicated region
  $region6: #{edge_classifier_forward.1} parent=0 // pred_check
    _
  $region7: #{edge_classifier_forward.1} parent=0 // pred_check_branch
    %17 = sbr.rel (0) target = $region9
  $region8: #{edge_classifier_forward.1} parent=0 // pred_region
    _
  $region9: #{edge_classifier_forward.1} parent=0 // pred_fallthru
    _
  // Predicated region
  $region10: #{edge_classifier_forward.1} parent=0 // pred_check
    _
  $region11: #{edge_classifier_forward.1} parent=0 // pred_check_branch
    %19 = sbr.rel (0) target = $region13
  $region12: #{edge_classifier_forward.1} parent=0 // pred_region
    _
  $region13: #{edge_classifier_forward.1} parent=0 // pred_fallthru
    _
  // Predicated region
  $region14: #{edge_classifier_forward.1} parent=0 // pred_check
    _
  $region15: #{edge_classifier_forward.1} parent=0 // pred_check_branch
    %21 = sbr.rel (0) target = $region17
  $region16: #{edge_classifier_forward.1} parent=0 // pred_region
    _
  $region17: #{edge_classifier_forward.1} parent=0 // pred_fallthru
    _
  // Predicated region
  $region18: #{edge_classifier_forward.1} parent=0 // pred_check
    _
  $region19: #{edge_classifier_forward.1} parent=0 // pred_check_branch
    %23 = sbr.rel (0) target = $region21
  $region20: #{edge_classifier_forward.1} parent=0 // pred_region
    _
  $region21: #{edge_classifier_forward.1} parent=0 // pred_fallthru
    _
  // Predicated region
  $region22: #{edge_classifier_forward.1} parent=0 // pred_check
    _
  $region23: #{edge_classifier_forward.1} parent=0 // pred_check_branch
    %25 = sbr.rel (0) target = $region25
  $region24: #{edge_classifier_forward.1} parent=0 // pred_region
    _
  $region25: #{edge_classifier_forward.1} parent=0 // pred_fallthru
    _
  // Predicated region
  $region26: #{edge_classifier_forward.1} parent=0 // pred_check
    _
  $region27: #{edge_classifier_forward.1} parent=0 // pred_check_branch
    %27 = sbr.rel (0) target = $region29
  $region28: #{edge_classifier_forward.1} parent=0 // pred_region
    _
  $region29: #{edge_classifier_forward.1} parent=0 // pred_fallthru
    _
  // Predicated region
  $region30: #{edge_classifier_forward.1} parent=0 // pred_check
    _
  $region31: #{edge_classifier_forward.1} parent=0 // pred_check_branch
    %29 = sbr.rel (0) target = $region33
  $region32: #{edge_classifier_forward.1} parent=0 // pred_region
    _
  $region33: #{edge_classifier_forward.1} parent=0 // pred_fallthru
    _
  // Predicated region
  $region34: #{edge_classifier_forward.1} parent=0 // pred_check
    _
  $region35: #{edge_classifier_forward.1} parent=0 // pred_check_branch
    %31 = sbr.rel (0) target = $region37
  $region36: #{edge_classifier_forward.1} parent=0 // pred_region
    _
  $region37: #{edge_classifier_forward.1} parent=0 // pred_fallthru
    _
  %v32 = vld [vmem:[%s8] sm:$0x1]
  %v33 = vld [vmem:[%s8 + $0x1] sm:$0x1]
  %v34 = vld [vmem:[%s8 + $0x2] sm:$0x1]
  %v35 = vld [vmem:[%s8 + $0x3] sm:$0x1]
  %v36 = vld [vmem:[%s0] sm:$0xff]
  %v37 = vld [vmem:[%s0 + $0x8] sm:$0xff]
  %v38 = vld [vmem:[%s2] sm:$0x3f]
  %vm39 = vcmask 48128
  %v41 = vsel %vm39, %v36, 0
  %v44 = vsel %vm39, %v37, 0
  %vm46 = vcmask 1045504
  %v48 = vsel %vm46, %v38, 0
  %50 = vmatpush.msra.mxu0 0.0
  %51 = vmatpush.msra.mxu0 0.0
  %52 = vmatpush.msra.mxu0 0.0
  %53 = vmatpush.msra.mxu0 0.0
  %54 = vmatpush.msra.mxu0 0.0
  %55 = vmatpush.msra.mxu0 0.0
  %56 = vmatpush.msra.mxu0 0.0
  %57 = vmatpush.msra.mxu0 0.0
  %58 = vmatpush.msra.mxu0 0.0
  %59 = vmatpush.msra.mxu0 0.0
  %60 = vmatpush.msra.mxu0 0.0
  %61 = vmatpush.msra.mxu0 0.0
  %62 = vmatpush.msra.mxu0 0.0
  %63 = vmatpush.msra.mxu0 0.0
  %64 = vmatpush.msra.mxu0 0.0
  %65 = vmatpush.msra.mxu0 %v48
  %66 = vmatmul.f32.gmra.mxu0 %v41
  %v67 = vpop.f32.mrf.mxu0
  %v68 = vadd.f32 0.0, %v67
  %69 = vmatmul.f32.gmra.mxu0 %v44
  %v70 = vpop.f32.mrf.mxu0
  %v71 = vadd.f32 0.0, %v70
  %72 = vdwg.mxu0
  %v73 = vld [vmem:[%s1] sm:$0xff]
  %v74 = vld [vmem:[%s1 + $0x8] sm:$0xff]
  %v75 = vperm.slane %v32, 0
  %vm76 = vcmask 130048
  %v78 = vsel %vm76, %v73, 0
  %v81 = vsel %vm76, %v74, 0
  %83 = vmatpush.msra.mxu0 0.0
  %84 = vmatpush.msra.mxu0 0.0
  %85 = vmatpush.msra.mxu0 0.0
  %86 = vmatpush.msra.mxu0 0.0
  %87 = vmatpush.msra.mxu0 0.0
  %88 = vmatpush.msra.mxu0 0.0
  %89 = vmatpush.msra.mxu0 0.0
  %90 = vmatpush.msra.mxu0 0.0
  %91 = vmatpush.msra.mxu0 0.0
  %92 = vmatpush.msra.mxu0 0.0
  %93 = vmatpush.msra.mxu0 0.0
  %94 = vmatpush.msra.mxu0 0.0
  %95 = vmatpush.msra.mxu0 0.0
  %96 = vmatpush.msra.mxu0 0.0
  %97 = vmatpush.msra.mxu0 %v71
  %98 = vmatpush.msra.mxu0 %v68
  %99 = vmatmul.f32.gmra.mxu0 %v78
  %v100 = vpop.f32.mrf.mxu0
  %v101 = vadd.f32 %v75, %v100
  %102 = vmatmul.f32.gmra.mxu0 %v81
  %v103 = vpop.f32.mrf.mxu0
  %v104 = vadd.f32 %v75, %v103
  %105 = vdwg.mxu0
  %v106 = vmax.f32 %v101, 0.0
  %v107 = vmax.f32 %v104, 0.0
  %v108 = vld [vmem:[%s3] sm:$0xff]
  %v109 = vld [vmem:[%s3 + $0x8] sm:$0xff]
  %v110 = vld [vmem:[%s3 + $0x10] sm:$0xff]
  %v111 = vld [vmem:[%s3 + $0x18] sm:$0xff]
  %vm112 = vcmask 261120
  %v114 = vsel %vm112, %v106, 0
  %v117 = vsel %vm112, %v107, 0
  %119 = vmatpush.msra.mxu0 0.0
  %120 = vmatpush.msra.mxu0 0.0
  %121 = vmatpush.msra.mxu0 0.0
  %122 = vmatpush.msra.mxu0 0.0
  %123 = vmatpush.msra.mxu0 0.0
  %124 = vmatpush.msra.mxu0 0.0
  %125 = vmatpush.msra.mxu0 0.0
  %126 = vmatpush.msra.mxu0 0.0
  %127 = vmatpush.msra.mxu0 0.0
  %128 = vmatpush.msra.mxu0 0.0
  %129 = vmatpush.msra.mxu0 0.0
  %130 = vmatpush.msra.mxu0 0.0
  %131 = vmatpush.msra.mxu0 %v111
  %132 = vmatpush.msra.mxu0 %v110
  %133 = vmatpush.msra.mxu0 %v109
  %134 = vmatpush.msra.mxu0 %v108
  %135 = vmatmul.f32.gmra.mxu0 %v114
  %v136 = vpop.f32.mrf.mxu0
  %v137 = vadd.f32 0.0, %v136
  %138 = vmatmul.f32.gmra.mxu0 %v117
  %v139 = vpop.f32.mrf.mxu0
  %v140 = vadd.f32 0.0, %v139
  %141 = vdwg.mxu0
  %v142 = vperm.slane %v33, 0
  %143 = vmatpush.msra.mxu0 0.0
  %144 = vmatpush.msra.mxu0 0.0
  %145 = vmatpush.msra.mxu0 0.0
  %146 = vmatpush.msra.mxu0 0.0
  %147 = vmatpush.msra.mxu0 0.0
  %148 = vmatpush.msra.mxu0 0.0
  %149 = vmatpush.msra.mxu0 0.0
  %150 = vmatpush.msra.mxu0 0.0
  %151 = vmatpush.msra.mxu0 0.0
  %152 = vmatpush.msra.mxu0 0.0
  %153 = vmatpush.msra.mxu0 0.0
  %154 = vmatpush.msra.mxu0 0.0
  %155 = vmatpush.msra.mxu0 0.0
  %156 = vmatpush.msra.mxu0 0.0
  %157 = vmatpush.msra.mxu0 %v140
  %158 = vmatpush.msra.mxu0 %v137
  %159 = vmatmul.f32.gmra.mxu0 %v78
  %v160 = vpop.f32.mrf.mxu0
  %v161 = vadd.f32 %v142, %v160
  %162 = vmatmul.f32.gmra.mxu0 %v81
  %v163 = vpop.f32.mrf.mxu0
  %v164 = vadd.f32 %v142, %v163
  %165 = vdwg.mxu0
  %v166 = vmax.f32 %v161, 0.0
  %v167 = vmax.f32 %v164, 0.0
  %v168 = vld [vmem:[%s4] sm:$0xff]
  %v169 = vld [vmem:[%s4 + $0x8] sm:$0xff]
  %v170 = vld [vmem:[%s4 + $0x10] sm:$0xff]
  %v171 = vld [vmem:[%s4 + $0x18] sm:$0xff]
  %v172 = vld [vmem:[%s4 + $0x20] sm:$0xff]
  %v173 = vld [vmem:[%s4 + $0x28] sm:$0xff]
  %v175 = vsel %vm76, %v168, 0
  %v178 = vsel %vm76, %v169, 0
  %v181 = vsel %vm76, %v170, 0
  %v184 = vsel %vm76, %v171, 0
  %v187 = vsel %vm76, %v172, 0
  %v190 = vsel %vm76, %v173, 0
  %192 = vmatpush.msra.mxu0 0.0
  %193 = vmatpush.msra.mxu0 0.0
  %194 = vmatpush.msra.mxu0 0.0
  %195 = vmatpush.msra.mxu0 0.0
  %196 = vmatpush.msra.mxu0 0.0
  %197 = vmatpush.msra.mxu0 0.0
  %198 = vmatpush.msra.mxu0 0.0
  %199 = vmatpush.msra.mxu0 0.0
  %200 = vmatpush.msra.mxu0 0.0
  %201 = vmatpush.msra.mxu0 0.0
  %202 = vmatpush.msra.mxu0 0.0
  %203 = vmatpush.msra.mxu0 0.0
  %204 = vmatpush.msra.mxu0 0.0
  %205 = vmatpush.msra.mxu0 0.0
  %206 = vmatpush.msra.mxu0 %v167
  %207 = vmatpush.msra.mxu0 %v166
  %208 = vmatmul.f32.gmra.mxu0 %v175
  %v209 = vpop.f32.mrf.mxu0
  %v210 = vadd.f32 0.0, %v209
  %211 = vmatmul.f32.gmra.mxu0 %v178
  %v212 = vpop.f32.mrf.mxu0
  %v213 = vadd.f32 0.0, %v212
  %214 = vmatmul.f32.gmra.mxu0 %v181
  %v215 = vpop.f32.mrf.mxu0
  %v216 = vadd.f32 0.0, %v215
  %217 = vmatmul.f32.gmra.mxu0 %v184
  %v218 = vpop.f32.mrf.mxu0
  %v219 = vadd.f32 0.0, %v218
  %220 = vmatmul.f32.gmra.mxu0 %v187
  %v221 = vpop.f32.mrf.mxu0
  %v222 = vadd.f32 0.0, %v221
  %223 = vmatmul.f32.gmra.mxu0 %v190
  %v224 = vpop.f32.mrf.mxu0
  %v225 = vadd.f32 0.0, %v224
  %226 = vdwg.mxu0
  %v227 = vld [vmem:[%s5] sm:$0xff]
  %v228 = vld [vmem:[%s5 + $0x8] sm:$0xff]
  %v229 = vld [vmem:[%s5 + $0x10] sm:$0xff]
  %233 = vrot.lane.b32.xlu0 %v219, 32
  %v234 = vpop.permute.xlu0 %233
  %235 = vrot.lane.b32.xlu0 %v222, 32
  %v236 = vpop.permute.xlu0 %235
  %237 = vrot.lane.b32.xlu0 %v225, 32
  %v238 = vpop.permute.xlu0 %237
  %245 = vrot.lane.b32.xlu0 %v227, 64
  %v246 = vpop.permute.xlu0 %245
  %247 = vrot.lane.b32.xlu0 %v228, 64
  %v248 = vpop.permute.xlu0 %247
  %249 = vrot.lane.b32.xlu0 %v229, 64
  %v250 = vpop.permute.xlu0 %249
  %v254 = vsel %vm112, %v210, %v234
  %v255 = vsel %vm112, %v213, %v236
  %v256 = vsel %vm112, %v216, %v238
  %vm257 = vcmask 523264
  %v258 = vsel %vm257, %v254, %v246
  %v259 = vsel %vm257, %v255, %v248
  %v260 = vsel %vm257, %v256, %v250
  %v261 = vld [vmem:[%s6] sm:$0xff]
  %v262 = vld [vmem:[%s6 + $0x8] sm:$0xff]
  %v263 = vld [vmem:[%s6 + $0x10] sm:$0xff]
  %v264 = vld [vmem:[%s6 + $0x18] sm:$0xff]
  %v265 = vld [vmem:[%s6 + $0x20] sm:$0xff]
  %v266 = vld [vmem:[%s6 + $0x28] sm:$0xff]
  %v267 = vld [vmem:[%s6 + $0x30] sm:$0xff]
  %v268 = vld [vmem:[%s6 + $0x38] sm:$0xff]
  %v269 = vld [vmem:[%s6 + $0x40] sm:$0xf]
  %v270 = vperm.slane %v34, 0
  %vm271 = vcmask 556032
  %v273 = vsel %vm271, %v258, 0
  %v276 = vsel %vm271, %v259, 0
  %v279 = vsel %vm271, %v260, 0
  %vm281 = vcmask 1043456
  %v283 = vsel %vm281, %v269, 0
  %285 = vmatpush.msra.mxu0 0.0
  %286 = vmatpush.msra.mxu0 0.0
  %287 = vmatpush.msra.mxu0 0.0
  %288 = vmatpush.msra.mxu0 0.0
  %289 = vmatpush.msra.mxu0 0.0
  %290 = vmatpush.msra.mxu0 0.0
  %291 = vmatpush.msra.mxu0 0.0
  %292 = vmatpush.msra.mxu0 %v283
  %293 = vmatpush.msra.mxu0 %v268
  %294 = vmatpush.msra.mxu0 %v267
  %295 = vmatpush.msra.mxu0 %v266
  %296 = vmatpush.msra.mxu0 %v265
  %297 = vmatpush.msra.mxu0 %v264
  %298 = vmatpush.msra.mxu0 %v263
  %299 = vmatpush.msra.mxu0 %v262
  %300 = vmatpush.msra.mxu0 %v261
  %301 = vmatmul.f32.gmra.mxu0 %v273
  %v302 = vpop.f32.mrf.mxu0
  %v303 = vadd.f32 %v270, %v302
  %304 = vmatmul.f32.gmra.mxu0 %v276
  %v305 = vpop.f32.mrf.mxu0
  %v306 = vadd.f32 %v270, %v305
  %307 = vmatmul.f32.gmra.mxu0 %v279
  %v308 = vpop.f32.mrf.mxu0
  %v309 = vadd.f32 %v270, %v308
  %310 = vdwg.mxu0
  %v311 = vmax.f32 %v303, 0.0
  %v312 = vmax.f32 %v306, 0.0
  %v313 = vmax.f32 %v309, 0.0
  %v314 = vld [vmem:[%s7] sm:$0xff]
  %v315 = vld [vmem:[%s7 + $0x8] sm:$0xff]
  %v316 = vld [vmem:[%s7 + $0x10] sm:$0xff]
  %v317 = vld [vmem:[%s7 + $0x18] sm:$0xff]
  %v318 = vperm.slane %v35, 0
  %v320 = vsel %vm112, %v311, 0
  %v323 = vsel %vm112, %v312, 0
  %v326 = vsel %vm112, %v313, 0
  %328 = vmatpush.msra.mxu0 0.0
  %329 = vmatpush.msra.mxu0 0.0
  %330 = vmatpush.msra.mxu0 0.0
  %331 = vmatpush.msra.mxu0 0.0
  %332 = vmatpush.msra.mxu0 0.0
  %333 = vmatpush.msra.mxu0 0.0
  %334 = vmatpush.msra.mxu0 0.0
  %335 = vmatpush.msra.mxu0 0.0
  %336 = vmatpush.msra.mxu0 0.0
  %337 = vmatpush.msra.mxu0 0.0
  %338 = vmatpush.msra.mxu0 0.0
  %339 = vmatpush.msra.mxu0 0.0
  %340 = vmatpush.msra.mxu0 %v317
  %341 = vmatpush.msra.mxu0 %v316
  %342 = vmatpush.msra.mxu0 %v315
  %343 = vmatpush.msra.mxu0 %v314
  %344 = vmatmul.f32.gmra.mxu0 %v320
  %v345 = vpop.f32.mrf.mxu0
  %v346 = vadd.f32 %v318, %v345
  %347 = vmatmul.f32.gmra.mxu0 %v323
  %v348 = vpop.f32.mrf.mxu0
  %v349 = vadd.f32 %v318, %v348
  %350 = vmatmul.f32.gmra.mxu0 %v326
  %v351 = vpop.f32.mrf.mxu0
  %v352 = vadd.f32 %v318, %v351
  %353 = vdwg.mxu0
  %354 = vst [vmem:[%s9] sm:$0xff] %v346
  %355 = vst [vmem:[%s9 + $0x8] sm:$0xff] %v349
  %356 = vst [vmem:[%s9 + $0x10] sm:$0xff] %v352
  // Predicated region
  $region38: #{edge_classifier_forward.1} parent=0 // pred_check
    _
  $region39: #{edge_classifier_forward.1} parent=0 // pred_check_branch
    %358 = sbr.rel (0) target = $region41
  $region40: #{edge_classifier_forward.1} parent=0 // pred_region
    _
  $region41: #{edge_classifier_forward.1} parent=0 // pred_fallthru
    _
  // Predicated region
  $region42: #{edge_classifier_forward.1} parent=0 // pred_check
    _
  $region43: #{edge_classifier_forward.1} parent=0 // pred_check_branch
    %360 = sbr.rel (0) target = $region45
  $region44: #{edge_classifier_forward.1} parent=0 // pred_region
    _
  $region45: #{edge_classifier_forward.1} parent=0 // pred_fallthru
    _

</llo_original>
